<compile_context>
chip_gen: v6e
topology: v6e:2x2x1
jax: 0.10.0
libtpu: 0.0.40
codegen_flags: <defaults>
</compile_context>

<pallas_src>
import jax
import jax.numpy as jnp
from jax import lax
from jax.experimental import pallas as pl
from jax.experimental.pallas import tpu as pltpu


def _pick_k_chunk(w, kmax=512):
    """Input-column chunk for the block-diagonal column-butterfly selector."""
    if w <= kmax:
        return w
    divs = [d for d in range(2, kmax + 1, 2) if w % d == 0]
    for align in (256, 128):
        pref = [d for d in divs if d % align == 0]
        if pref:
            return max(pref)
    return max(divs) if divs else w


def _pick_tiles(b, c, h2, w, itemsize, target_bytes=3 << 20, min_steps=4):
    """Pick (channel tile, H2-row tile) targeting ~3 MiB blocks, >=min_steps grid."""
    mult = 8 if itemsize >= 4 else 16
    # Row tile: full dim if small/awkward (always layout-legal), else the
    # largest sublane-aligned divisor whose single-channel block fits budget.
    if h2 <= 4 * mult or h2 % mult != 0:
        th2 = h2
    else:
        max_rows = max(mult, min(h2, target_bytes // max(1, 2 * w * itemsize)))
        cands = [d for d in range(mult, h2 + 1, mult)
                 if h2 % d == 0 and d <= max_rows]
        th2 = max(cands) if cands else h2
    # Channel tile: channels are folded into the matmul M dim, so grow freely.
    per_ch = th2 * 2 * w * itemsize
    max_tc = max(1, target_bytes // max(1, per_ch))
    tc = max(d for d in range(1, c + 1) if c % d == 0 and d <= max_tc)

    def steps(tc_, th2_):
        return b * (c // tc_) * (h2 // th2_)

    # Keep the grid deep enough for DMA pipelining and (v7x) both TensorCores.
    while steps(tc, th2) < min_steps:
        if tc > 1:
            tc = max(d for d in range(1, tc) if c % d == 0)
        elif th2 % (2 * mult) == 0 and th2 > mult:
            th2 //= 2
        else:
            break
    return tc, th2


def dwt_forward(x, *, k_chunk=None):
    """Pallas implementation of dwt_init(x) for NCHW input x."""
    B, C, H, W = x.shape
    assert H % 2 == 0 and W % 2 == 0, "DWT requires even spatial dims"
    H2, W2 = H // 2, W // 2
    itemsize = jnp.dtype(x.dtype).itemsize

    # f32: exact butterfly needs HIGHEST; low-precision dtypes stay native on
    # the MXU (cheap on v5e) with an f32 accumulator.
    if x.dtype == jnp.float32:
        cdtype, prec = jnp.float32, lax.Precision.HIGHEST
    else:
        cdtype, prec = x.dtype, None
    csize = jnp.dtype(cdtype).itemsize

    tc, th2 = _pick_tiles(B, C, H2, W, itemsize)
    kb = _pick_k_chunk(W) if k_chunk is None else int(k_chunk)
    assert W % kb == 0 and kb % 2 == 0
    nk = W // kb
    kb2 = kb // 2

    # Free metadata reshape: output row h2 carries input row 2*h2 in lanes
    # [0, W) and input row 2*h2+1 in lanes [W, 2W).
    xr = x.reshape(B, C, H2, 2 * W)

    # Column-butterfly selector, identical for every K chunk (pairing pattern
    # is translation invariant), with the 0.5 scaling folded into the entries:
    #   (v @ sel)[:, :kb2] = 0.5*(v[:, 0::2] + v[:, 1::2])   (pair sum)
    #   (v @ sel)[:, kb2:] = 0.5*(v[:, 1::2] - v[:, 0::2])   (pair diff)
    rows = jnp.arange(kb, dtype=jnp.int32)[:, None]
    cols = jnp.arange(kb2, dtype=jnp.int32)[None, :]
    even = (rows == 2 * cols).astype(jnp.float32)
    odd = (rows == 2 * cols + 1).astype(jnp.float32)
    sel = jnp.concatenate([0.5 * (even + odd), 0.5 * (odd - even)], axis=1)
    sel = sel.astype(cdtype)                                   # (kb, kb) = [P|M]

    grid = (B, C // tc, H2 // th2)

    def kernel(sel_ref, x_ref, o_ref):
        sel_v = sel_ref[...]                                   # (kb, kb)
        blk = x_ref[0].reshape(tc * th2, 2 * W)                # channels -> M dim
        if blk.dtype != cdtype:
            blk = blk.astype(cdtype)
        xe = blk[:, :W]                                        # even input rows
        xo = blk[:, W:]                                        # odd input rows
        s = xe + xo                                            # 2*(x01 + x02)
        d = xo - xe                                            # 2*(x02 - x01)
        for j in range(nk):                                    # static; usually 1
            s_j = s[:, j * kb:(j + 1) * kb] if nk > 1 else s
            d_j = d[:, j * kb:(j + 1) * kb] if nk > 1 else d
            rs = jnp.dot(s_j, sel_v, preferred_element_type=jnp.float32,
                         precision=prec)                       # [LL_j | HL_j]
            rd = jnp.dot(d_j, sel_v, preferred_element_type=jnp.float32,
                         precision=prec)                       # [LH_j | HH_j]
            rs = rs.astype(o_ref.dtype).reshape(tc, th2, kb)
            rd = rd.astype(o_ref.dtype).reshape(tc, th2, kb)
            c0 = j * kb2
            o_ref[0, 0, :, :, c0:c0 + kb2] = rs[:, :, :kb2]    # LL
            o_ref[0, 1, :, :, c0:c0 + kb2] = rs[:, :, kb2:]    # HL
            o_ref[0, 2, :, :, c0:c0 + kb2] = rd[:, :, :kb2]    # LH
            o_ref[0, 3, :, :, c0:c0 + kb2] = rd[:, :, kb2:]    # HH

    # Explicit VMEM accounting: double-buffered in/out blocks + selector pair
    # + f32/compute temps (s, d, matmul results), with headroom, capped for v7x.
    in_block = tc * th2 * 2 * W * itemsize
    out_block = 4 * tc * th2 * W2 * itemsize
    temps = 6 * tc * th2 * W * csize + 4 * tc * th2 * kb * 4
    sel_bytes = kb * kb * csize
    vmem_need = 2 * (in_block + out_block) + 2 * sel_bytes + temps
    vmem_limit = int(min(max(vmem_need + (8 << 20), 32 << 20), 64 << 20))

    out = pl.pallas_call(
        kernel,
        out_shape=jax.ShapeDtypeStruct((B, 4, C, H2, W2), x.dtype),
        grid_spec=pltpu.PrefetchScalarGridSpec(
            num_scalar_prefetch=0,
            grid=grid,
            in_specs=[
                pl.BlockSpec((kb, kb), lambda b, c, h: (0, 0)),
                pl.BlockSpec((1, tc, th2, 2 * W), lambda b, c, h: (b, c, h, 0)),
            ],
            out_specs=pl.BlockSpec((1, 4, tc, th2, W2),
                                   lambda b, c, h: (b, 0, c, h, 0)),
        ),
        compiler_params=pltpu.CompilerParams(
            dimension_semantics=("parallel", "parallel", "parallel"),
            vmem_limit_bytes=vmem_limit,
        ),
        cost_estimate=pl.CostEstimate(
            flops=(2 * kb + 2) * x.size,          # MXU butterfly + VPU adds
            transcendentals=0,
            bytes_accessed=2 * x.size * itemsize, # single read + single write
        ),
    )(sel, xr)

    # (B, 4, C, H2, W2) -> (B, 4C, H2, W2): pure metadata reshape.
    return out.reshape(B, 4 * C, H2, W2)


def _dwt_reference(x):
    """Pure-JAX reference mirroring the PyTorch dwt_init exactly."""
    x01 = x[:, :, 0::2, :] / 2
    x02 = x[:, :, 1::2, :] / 2
    x1 = x01[:, :, :, 0::2]
    x2 = x02[:, :, :, 0::2]
    x3 = x01[:, :, :, 1::2]
    x4 = x02[:, :, :, 1::2]
    x_LL = x1 + x2 + x3 + x4
    x_HL = -x1 - x2 + x3 + x4
    x_LH = -x1 + x2 - x3 + x4
    x_HH = x1 - x2 - x3 + x4
    return jnp.concatenate((x_LL, x_HL, x_LH, x_HH), axis=1)


if __name__ == "__main__":
    # DWT has no learnable parameters; only the input is needed.
    key = jax.random.PRNGKey(0)
    x = jax.random.normal(key, (2, 4, 16, 16), dtype=jnp.float32)

    y = jax.block_until_ready(dwt_forward(x))
    y_ref = _dwt_reference(x)
    assert y.shape == (2, 16, 8, 8), y.shape
    err = float(jnp.max(jnp.abs(y - y_ref)))
    assert jnp.allclose(y, y_ref, atol=1e-5, rtol=1e-5), err

    # Also exercise the block-diagonal (K-chunked) selector path.
    y2 = jax.block_until_ready(dwt_forward(x, k_chunk=8))
    err2 = float(jnp.max(jnp.abs(y2 - y_ref)))
    assert jnp.allclose(y2, y_ref, atol=1e-5, rtol=1e-5), err2

    print("KERNEL_OK")
</pallas_src>

<mosaic_0001>
module attributes {stable_mosaic.version = 11 : i64} {
  func.func @kernel(%arg0: i32, %arg1: i32, %arg2: i32, %arg3: memref<16x16xf32, #tpu.memory_space<vmem>>, %arg4: memref<1x2x8x32xf32, #tpu.memory_space<vmem>>, %arg5: memref<1x4x2x8x8xf32, #tpu.memory_space<vmem>>) attributes {dimension_semantics = [#tpu.dimension_semantics<parallel>, #tpu.dimension_semantics<parallel>, #tpu.dimension_semantics<parallel>], iteration_bounds = array<i64: 2, 2, 1>, scalar_prefetch = 0 : i64, scratch_operands = 0 : i64, tpu.core_type = #tpu.core_type<tc>, window_params = [{pipeline_mode = #tpu.pipeline_mode<synchronous>, transform_indices = @transform_0, window_bounds = array<i64: 16, 16>}, {transform_indices = @transform_1, window_bounds = array<i64: 1, 2, 8, 32>}, {transform_indices = @transform_2, window_bounds = array<i64: 1, 4, 2, 8, 8>}]} {
    %c0 = arith.constant 0 : index
    %c0_0 = arith.constant 0 : index
    %0 = vector.load %arg3[%c0, %c0_0] : memref<16x16xf32, #tpu.memory_space<vmem>>, vector<16x16xf32>
    %c0_1 = arith.constant 0 : index
    %c0_2 = arith.constant 0 : index
    %c0_3 = arith.constant 0 : index
    %c0_4 = arith.constant 0 : index
    %1 = vector.load %arg4[%c0_1, %c0_2, %c0_3, %c0_4] : memref<1x2x8x32xf32, #tpu.memory_space<vmem>>, vector<1x2x8x32xf32>
    %2 = vector.shape_cast %1 : vector<1x2x8x32xf32> to vector<2x8x32xf32>
    %3 = vector.shape_cast %2 : vector<2x8x32xf32> to vector<16x32xf32>
    %4 = vector.extract_strided_slice %3 {offsets = [0, 0], sizes = [16, 16], strides = [1, 1]} : vector<16x32xf32> to vector<16x16xf32>
    %5 = vector.extract_strided_slice %3 {offsets = [0, 16], sizes = [16, 16], strides = [1, 1]} : vector<16x32xf32> to vector<16x16xf32>
    %6 = arith.addf %4, %5 : vector<16x16xf32>
    %7 = arith.subf %5, %4 : vector<16x16xf32>
    %cst = arith.constant dense<0.000000e+00> : vector<16x16xf32>
    %8 = tpu.matmul %6, %0, %cst {dimension_numbers = #tpu.dot_dimension_numbers<[1], [0], [0], [1], [0, 0, 1, 1], [], []>, precision = #tpu.contract_precision<fp32>} : vector<16x16xf32>, vector<16x16xf32>, vector<16x16xf32> -> vector<16x16xf32>
    %cst_5 = arith.constant dense<0.000000e+00> : vector<16x16xf32>
    %9 = tpu.matmul %7, %0, %cst_5 {dimension_numbers = #tpu.dot_dimension_numbers<[1], [0], [0], [1], [0, 0, 1, 1], [], []>, precision = #tpu.contract_precision<fp32>} : vector<16x16xf32>, vector<16x16xf32>, vector<16x16xf32> -> vector<16x16xf32>
    %10 = vector.shape_cast %8 : vector<16x16xf32> to vector<2x8x16xf32>
    %11 = vector.shape_cast %9 : vector<16x16xf32> to vector<2x8x16xf32>
    %12 = vector.extract_strided_slice %10 {offsets = [0, 0, 0], sizes = [2, 8, 8], strides = [1, 1, 1]} : vector<2x8x16xf32> to vector<2x8x8xf32>
    %c0_6 = arith.constant 0 : index
    %c0_7 = arith.constant 0 : index
    %c0_8 = arith.constant 0 : index
    %c0_9 = arith.constant 0 : index
    %c0_10 = arith.constant 0 : index
    %13 = vector.load %arg5[%c0_6, %c0_7, %c0_8, %c0_9, %c0_10] : memref<1x4x2x8x8xf32, #tpu.memory_space<vmem>>, vector<1x1x2x8x8xf32>
    %14 = vector.shape_cast %13 : vector<1x1x2x8x8xf32> to vector<2x8x8xf32>
    %15 = vector.shape_cast %12 : vector<2x8x8xf32> to vector<1x1x2x8x8xf32>
    tpu.vector_store %arg5[%c0_6, %c0_7, %c0_8, %c0_9, %c0_10], %15 {strides = array<i32>} : memref<1x4x2x8x8xf32, #tpu.memory_space<vmem>>, vector<1x1x2x8x8xf32>,
    %16 = vector.extract_strided_slice %10 {offsets = [0, 0, 8], sizes = [2, 8, 8], strides = [1, 1, 1]} : vector<2x8x16xf32> to vector<2x8x8xf32>
    %c0_11 = arith.constant 0 : index
    %c1 = arith.constant 1 : index
    %c0_12 = arith.constant 0 : index
    %c0_13 = arith.constant 0 : index
    %c0_14 = arith.constant 0 : index
    %17 = vector.load %arg5[%c0_11, %c1, %c0_12, %c0_13, %c0_14] : memref<1x4x2x8x8xf32, #tpu.memory_space<vmem>>, vector<1x1x2x8x8xf32>
    %18 = vector.shape_cast %17 : vector<1x1x2x8x8xf32> to vector<2x8x8xf32>
    %19 = vector.shape_cast %16 : vector<2x8x8xf32> to vector<1x1x2x8x8xf32>
    tpu.vector_store %arg5[%c0_11, %c1, %c0_12, %c0_13, %c0_14], %19 {strides = array<i32>} : memref<1x4x2x8x8xf32, #tpu.memory_space<vmem>>, vector<1x1x2x8x8xf32>,
    %20 = vector.extract_strided_slice %11 {offsets = [0, 0, 0], sizes = [2, 8, 8], strides = [1, 1, 1]} : vector<2x8x16xf32> to vector<2x8x8xf32>
    %c0_15 = arith.constant 0 : index
    %c2 = arith.constant 2 : index
    %c0_16 = arith.constant 0 : index
    %c0_17 = arith.constant 0 : index
    %c0_18 = arith.constant 0 : index
    %21 = vector.load %arg5[%c0_15, %c2, %c0_16, %c0_17, %c0_18] : memref<1x4x2x8x8xf32, #tpu.memory_space<vmem>>, vector<1x1x2x8x8xf32>
    %22 = vector.shape_cast %21 : vector<1x1x2x8x8xf32> to vector<2x8x8xf32>
    %23 = vector.shape_cast %20 : vector<2x8x8xf32> to vector<1x1x2x8x8xf32>
    tpu.vector_store %arg5[%c0_15, %c2, %c0_16, %c0_17, %c0_18], %23 {strides = array<i32>} : memref<1x4x2x8x8xf32, #tpu.memory_space<vmem>>, vector<1x1x2x8x8xf32>,
    %24 = vector.extract_strided_slice %11 {offsets = [0, 0, 8], sizes = [2, 8, 8], strides = [1, 1, 1]} : vector<2x8x16xf32> to vector<2x8x8xf32>
    %c0_19 = arith.constant 0 : index
    %c3 = arith.constant 3 : index
    %c0_20 = arith.constant 0 : index
    %c0_21 = arith.constant 0 : index
    %c0_22 = arith.constant 0 : index
    %25 = vector.load %arg5[%c0_19, %c3, %c0_20, %c0_21, %c0_22] : memref<1x4x2x8x8xf32, #tpu.memory_space<vmem>>, vector<1x1x2x8x8xf32>
    %26 = vector.shape_cast %25 : vector<1x1x2x8x8xf32> to vector<2x8x8xf32>
    %27 = vector.shape_cast %24 : vector<2x8x8xf32> to vector<1x1x2x8x8xf32>
    tpu.vector_store %arg5[%c0_19, %c3, %c0_20, %c0_21, %c0_22], %27 {strides = array<i32>} : memref<1x4x2x8x8xf32, #tpu.memory_space<vmem>>, vector<1x1x2x8x8xf32>,
    return
  }
  func.func @transform_0(%arg0: i32, %arg1: i32, %arg2: i32) -> (i32, i32) {
    %c0_i32 = arith.constant 0 : i32
    %c0_i32_0 = arith.constant 0 : i32
    %c0_i32_1 = arith.constant 0 : i32
    return %c0_i32, %c0_i32_0 : i32, i32
  }
  func.func @transform_1(%arg0: i32, %arg1: i32, %arg2: i32) -> (i32, i32, i32, i32) {
    %c0_i32 = arith.constant 0 : i32
    %c0_i32_0 = arith.constant 0 : i32
    return %arg0, %arg1, %arg2, %c0_i32 : i32, i32, i32, i32
  }
  func.func @transform_2(%arg0: i32, %arg1: i32, %arg2: i32) -> (i32, i32, i32, i32, i32) {
    %c0_i32 = arith.constant 0 : i32
    %c0_i32_0 = arith.constant 0 : i32
    %c0_i32_1 = arith.constant 0 : i32
    return %arg0, %c0_i32, %arg1, %arg2, %c0_i32_0 : i32, i32, i32, i32, i32
  }
}

</mosaic_0001>

<llo_original>
// kernel: tpu_custom_call.1
$region0: #{tpu_custom_call.1}
  #allocation0 [shape = 'u32[]', space=smem, size = 0x4, offset = 0x4, fixed_abs, tag = 'smem constant byte address 0x4 - core index']
  #allocation1 [shape = 'u32[144,128]{1,0:T(1,128)}', space=vmem, size = 0x12000, scoped, tag = 'internal scratch']
  #allocation8 [shape = 's32[]', space=sflag, size = 0x4, offset = 0, fixed_abs, tag = 'sflag constant byte address 0x0 - dummy sync flag']
  %s0 = inlined_call_operand.hbm [shape: f32[16,16], index: 0, kind: input, shape index: {}]
  %s1 = inlined_call_operand.hbm [shape: f32[2,4,8,32], index: 1, kind: input, shape index: {}]
  %s2 = inlined_call_operand.hbm [shape: f32[2,4,4,8,8], index: 2, kind: output, shape index: {}]
  %s3 = sld [smem:[#allocation0]]
  $region49: #{tpu_custom_call.1} parent=0
    _
  %s5 = ssub.s32 1, %s3
  %s6 = scalar_select 0, %s5, %s3
  $region1: #{tpu_custom_call.1} parent=0
    #allocation2 [shape = 'u8[8192]{0}', space=vmem, size = 0x2000, scoped, tag = 'input window, operand 0, single buffered']
    #allocation3 [shape = 's32[2]{0}', space=sflag, size = 0x8, scoped, tag = 'scoped memory for tpu_custom_call.1']
    #allocation4 [shape = 's32[2]{0}', space=sflag, size = 0x8, scoped, tag = 'scoped memory for tpu_custom_call.1']
    #allocation5 [shape = 'u8[16384]{0}', space=vmem, size = 0x4000, scoped, tag = 'input window, operand 1']
    #allocation6 [shape = 's32[2]{0}', space=sflag, size = 0x8, scoped, tag = 'scoped memory for tpu_custom_call.1']
    #allocation7 [shape = 'u8[65536]{0}', space=vmem, size = 0x10000, scoped, tag = 'output window, operand 0']
    %7 = vsyncpa [#allocation3], 0
    %8 = vsyncpa [#allocation6], 0
    %s9 = scalar_lea.sflag [#allocation6], 1
    %10 = vsyncpa %s9, 0
    %11 = vsyncpa [#allocation4], 0
    %s12 = scalar_lea.sflag [#allocation4], 1
    %13 = vsyncpa %s12, 0
    loop: start=0, step=1, limit=6
    $region2: #{tpu_custom_call.1} parent=1 // loop_pre_header
      _
    $region3: #{tpu_custom_call.1} parent=1 // loop_header
      %s15 = sphi 0, %s19
      %p16 = scmp.ge.s32.totalorder %s15, 6
      %s22 = sphi 0, %s41
      %s23 = sphi 0, %s37
      %s24 = sphi 0, %s33
      %s25 = sphi 0, %s22
      %s26 = sphi 0, %s23
      %s27 = sphi 0, %s24
      %s28 = sphi 0, %s25
      %s29 = sphi 0, %s26
      %s30 = sphi 0, %s27
      %s42 = sphi 0, %s42
      %s44 = sphi 0, %s42
      %s45 = sphi 0, %s44
      %s59 = sphi 0, %s45
      %s69 = sphi 0, %s71
      %s72 = sphi 0, %s69
      %s73 = sphi 0, %s72
      %s89 = sphi 0, %s73
      %s99 = sphi 0, %s101
      %s102 = sphi 0, %s99
      %s103 = sphi 0, %s102
      %s119 = sphi 0, %s103
    $region4: #{tpu_custom_call.1} parent=1 // loop_header_branch
      %18 = sbr.rel (%p16) target = $region8
    $region5: #{tpu_custom_call.1} parent=1 // loop_body
      %s20 = ssub.s32 %s15, 1
      %s21 = ssub.s32 %s15, 2
      %s31 = sadd.s32 1, %s24
      %p32 = scmp.ge.s32.totalorder %s31, 1
      %s33 = scalar_select %p32, 0, %s31
      %s34 = sadd.s32 1, %s23
      %s35 = scalar_select %p32, %s34, %s23
      %p36 = scmp.ge.s32.totalorder %s35, 2
      %s37 = scalar_select %p36, 0, %s35
      %s38 = sadd.s32 1, %s22
      %s39 = scalar_select %p36, %s38, %s22
      %p40 = scmp.ge.s32.totalorder %s39, 2
      %s41 = scalar_select %p40, 0, %s39
      %s43 = sadd.s32 %s42, 1
      %p46 = scmp.eq.s32.totalorder %s15, 3
      %p47 = scmp.ne.s32.totalorder %s42, %s44
      %p48 = scmp.eq.s32.totalorder %s15, 0
      %p49 = por %p47, %p48
      %p50 = scmp.ne.s32.totalorder %s42, %s44
      %p51 = scmp.eq.s32.totalorder %s20, 3
      %p52 = por %p50, %p51
      %p53 = scmp.ne.s32.totalorder %s44, %s45
      %p54 = scmp.eq.s32.totalorder %s20, 0
      %p55 = por %p53, %p54
      %p56 = scmp.ne.s32.totalorder %s44, %s45
      %p57 = scmp.eq.s32.totalorder %s21, 3
      %p58 = por %p56, %p57
      %p60 = scmp.ne.s32.totalorder %s45, %s59
      %p61 = scmp.eq.s32.totalorder %s21, 0
      %p62 = por %p60, %p61
      %s63 = ssub.s32 %s22, %s41
      %s64 = ssub.s32 %s23, %s37
      %s65 = sor.u32 %s63, %s64
      %s66 = ssub.s32 %s24, %s33
      %s67 = sor.u32 %s65, %s66
      %p68 = scmp.eq.s32.totalorder %s67, 0
      %s70 = sadd.s32 %s69, 1
      %s71 = scalar_select %p68, %s69, %s70
      %p74 = pneg %p68
      %p75 = scmp.eq.s32.totalorder %s15, 3
      %p76 = por %p74, %p75
      %p77 = scmp.ne.s32.totalorder %s69, %s72
      %p78 = scmp.eq.s32.totalorder %s15, 0
      %p79 = por %p77, %p78
      %p80 = scmp.ne.s32.totalorder %s69, %s72
      %p81 = scmp.eq.s32.totalorder %s20, 3
      %p82 = por %p80, %p81
      %p83 = scmp.ne.s32.totalorder %s72, %s73
      %p84 = scmp.eq.s32.totalorder %s20, 0
      %p85 = por %p83, %p84
      %p86 = scmp.ne.s32.totalorder %s72, %s73
      %p87 = scmp.eq.s32.totalorder %s21, 3
      %p88 = por %p86, %p87
      %p90 = scmp.ne.s32.totalorder %s73, %s89
      %p91 = scmp.eq.s32.totalorder %s21, 0
      %p92 = por %p90, %p91
      %s93 = ssub.s32 %s22, %s41
      %s94 = ssub.s32 %s23, %s37
      %s95 = sor.u32 %s93, %s94
      %s96 = ssub.s32 %s24, %s33
      %s97 = sor.u32 %s95, %s96
      %p98 = scmp.eq.s32.totalorder %s97, 0
      %s100 = sadd.s32 %s99, 1
      %s101 = scalar_select %p98, %s99, %s100
      %p104 = pneg %p98
      %p105 = scmp.eq.s32.totalorder %s15, 3
      %p106 = por %p104, %p105
      %p107 = scmp.ne.s32.totalorder %s99, %s102
      %p108 = scmp.eq.s32.totalorder %s15, 0
      %p109 = por %p107, %p108
      %p110 = scmp.ne.s32.totalorder %s99, %s102
      %p111 = scmp.eq.s32.totalorder %s20, 3
      %p112 = por %p110, %p111
      %p113 = scmp.ne.s32.totalorder %s102, %s103
      %p114 = scmp.eq.s32.totalorder %s20, 0
      %p115 = por %p113, %p114
      %p116 = scmp.ne.s32.totalorder %s102, %s103
      %p117 = scmp.eq.s32.totalorder %s21, 3
      %p118 = por %p116, %p117
      %p120 = scmp.ne.s32.totalorder %s103, %s119
      %p121 = scmp.eq.s32.totalorder %s21, 0
      %p122 = por %p120, %p121
      %p123 = scmp.le.s32.totalorder 1, %s15
      %p124 = scmp.lt.s32.totalorder %s15, 5
      %p125 = pnand %p123, %p124
      %p126 = pneg %p125
      // Predicated region
      $region9: #{tpu_custom_call.1} parent=5 // pred_check
        _
      $region10: #{tpu_custom_call.1} parent=5 // pred_check_branch
        %128 = sbr.rel (%p125) target = $region12
      $region11: #{tpu_custom_call.1} parent=5 // pred_region
        %s129 = ssub.s32 %s15, 1
        // Predicated region
        $region13: #{tpu_custom_call.1} parent=11 // pred_check
          %p130 = pneg %p55
        $region14: #{tpu_custom_call.1} parent=11 // pred_check_branch
          %132 = sbr.rel (%p130) target = $region16
        $region15: #{tpu_custom_call.1} parent=11 // pred_region
          %s134 = ssub.s32 256, 256
          %135 = vsyncadd [#allocation3], %s134
          %s136 = sshll.u32 [#allocation2], 4
          %s137 = int_to_ptr.vmem [resolvable:$true] %s136
          %142 = dma.hbm_to_vmem [thread:$0]  %s0, 256, %s137, [#allocation3], 128, 128, 8
        $region16: #{tpu_custom_call.1} parent=11 // pred_fallthru
          _
      $region12: #{tpu_custom_call.1} parent=5 // pred_fallthru
        _
      %p143 = scmp.lt.s32.totalorder %s15, 4
      // Predicated region
      $region17: #{tpu_custom_call.1} parent=5 // pred_check
        %p144 = pneg %p143
      $region18: #{tpu_custom_call.1} parent=5 // pred_check_branch
        %146 = sbr.rel (%p144) target = $region20
      $region19: #{tpu_custom_call.1} parent=5 // pred_region
        // Predicated region
        $region21: #{tpu_custom_call.1} parent=19 // pred_check
          %p147 = pneg %p79
        $region22: #{tpu_custom_call.1} parent=19 // pred_check_branch
          %149 = sbr.rel (%p147) target = $region24
        $region23: #{tpu_custom_call.1} parent=19 // pred_region
          %s150 = sand.u32 %s69, 1
          %s151 = scalar_lea.sflag [#allocation6], %s150
          %s152 = sand.u32 %s69, 1
          %s153 = smul.addr %s152, 16
          %s154 = scalar_lea.vmem [#allocation5], %s153
          %s155 = smul.u32 2, %s23
          %s157 = ssub.s32 256, 256
          %158 = vsyncadd %s151, %s157
          %s159 = sadd.s32 %s24, %s155
          %s160 = smul.addr %s22, 4
          %s161 = sadd.s32 %s159, %s160
          %s162 = smul.addr %s161, 128
          %s163 = scalar_lea.hbm %s1, %s162
          %s164 = sshll.u32 %s154, 4
          %s165 = int_to_ptr.vmem [resolvable:$true] %s164
          %170 = dma.hbm_to_vmem [thread:$0]  %s163, 256, %s165, %s151, 128, 128, 8
        $region24: #{tpu_custom_call.1} parent=19 // pred_fallthru
          _
      $region20: #{tpu_custom_call.1} parent=5 // pred_fallthru
        _
      %p171 = scmp.le.s32.totalorder 1, %s15
      %p172 = scmp.lt.s32.totalorder %s15, 5
      %p173 = pnand %p171, %p172
      %p174 = pneg %p173
      // Predicated region
      $region25: #{tpu_custom_call.1} parent=5 // pred_check
        _
      $region26: #{tpu_custom_call.1} parent=5 // pred_check_branch
        %176 = sbr.rel (%p173) target = $region28
      $region27: #{tpu_custom_call.1} parent=5 // pred_region
        %s177 = ssub.s32 %s15, 1
        // Predicated region
        $region29: #{tpu_custom_call.1} parent=27 // pred_check
          %p178 = pneg %p55
        $region30: #{tpu_custom_call.1} parent=27 // pred_check_branch
          %180 = sbr.rel (%p178) target = $region32
        $region31: #{tpu_custom_call.1} parent=27 // pred_region
          %181 = dma.done [#allocation3], 256
        $region32: #{tpu_custom_call.1} parent=27 // pred_fallthru
          _
        %s182 = sand.u32 %s72, 1
        %s183 = scalar_lea.sflag [#allocation6], %s182
        %s184 = sand.u32 %s72, 1
        %s185 = smul.addr %s184, 16
        %s186 = scalar_lea.vmem [#allocation5], %s185
        // Predicated region
        $region33: #{tpu_custom_call.1} parent=27 // pred_check
          %p187 = pneg %p85
        $region34: #{tpu_custom_call.1} parent=27 // pred_check_branch
          %189 = sbr.rel (%p187) target = $region36
        $region35: #{tpu_custom_call.1} parent=27 // pred_region
          %190 = dma.done %s183, 256
        $region36: #{tpu_custom_call.1} parent=27 // pred_fallthru
          _
        %p191 = pneg %p55
        %p192 = pneg %p52
        %s193 = sand.u32 %s72, 1
        %s194 = scalar_lea.sflag [#allocation6], %s193
        %s195 = sand.u32 %s72, 1
        %s196 = smul.addr %s195, 16
        %s197 = scalar_lea.vmem [#allocation5], %s196
        %p198 = pneg %p85
        %p199 = pneg %p82
        %p200 = pneg %p115
        %p201 = pneg %p112
        %s202 = sand.u32 %s102, 1
        %s203 = scalar_lea.sflag [#allocation4], %s202
        %s204 = sand.u32 %s102, 1
        %s205 = smul.addr %s204, 64
        %s206 = scalar_lea.vmem [#allocation7], %s205
        %s207 = smul.u32 2, %s26
        %s208 = smul.u32 2, %s26
        %v209 = vld [vmem:[#allocation2] sm:$0xff]
        %v210 = vld [vmem:[#allocation2 + $0x8] sm:$0xff]
        %v211 = vld [vmem:[%s186] sm:$0xff]
        %v212 = vld [vmem:[%s186 + $0x8] sm:$0xff]
        %215 = vrot.lane.b32.xlu0 %v211, 112
        %v216 = vpop.permute.xlu0 %215
        %217 = vrot.lane.b32.xlu0 %v212, 112
        %v218 = vpop.permute.xlu0 %217
        %v221 = vadd.f32 %v211, %v216
        %v222 = vadd.f32 %v212, %v218
        %223 = vrot.lane.b32.xlu0 %v211, 16
        %v224 = vpop.permute.xlu0 %223
        %225 = vrot.lane.b32.xlu0 %v212, 16
        %v226 = vpop.permute.xlu0 %225
        %v229 = vsub.f32 %v211, %v224
        %v230 = vsub.f32 %v212, %v226
        %vm231 = vcmask 130048
        %v233 = vsel %vm231, %v221, 0
        %v236 = vsel %vm231, %v222, 0
        %238 = vmatprep.subr.mxu0 0.0
        %239 = vmatpush1.msra.mxu0 0.0
        %240 = vmatprep.subr.mxu0 0.0
        %241 = vmatpush1.msra.mxu0 0.0
        %242 = vmatprep.subr.mxu0 0.0
        %243 = vmatpush1.msra.mxu0 0.0
        %244 = vmatprep.subr.mxu0 0.0
        %245 = vmatpush1.msra.mxu0 0.0
        %246 = vmatprep.subr.mxu0 0.0
        %247 = vmatpush1.msra.mxu0 0.0
        %248 = vmatprep.subr.mxu0 0.0
        %249 = vmatpush1.msra.mxu0 0.0
        %250 = vmatprep.subr.mxu0 0.0
        %251 = vmatpush1.msra.mxu0 0.0
        %252 = vmatprep.subr.mxu0 0.0
        %253 = vmatpush1.msra.mxu0 0.0
        %254 = vmatprep.subr.mxu0 0.0
        %255 = vmatpush1.msra.mxu0 0.0
        %256 = vmatprep.subr.mxu0 0.0
        %257 = vmatpush1.msra.mxu0 0.0
        %258 = vmatprep.subr.mxu0 0.0
        %259 = vmatpush1.msra.mxu0 0.0
        %260 = vmatprep.subr.mxu0 0.0
        %261 = vmatpush1.msra.mxu0 0.0
        %262 = vmatprep.subr.mxu0 0.0
        %263 = vmatpush1.msra.mxu0 0.0
        %264 = vmatprep.subr.mxu0 0.0
        %265 = vmatpush1.msra.mxu0 0.0
        %266 = vmatprep.subr.mxu0 0.0
        %v267 = vand.u32 %v210, 4294901760
        %268 = vmatpush1.msra.mxu0 %v267
        %269 = vmatprep.subr.mxu0 0.0
        %v270 = vand.u32 %v209, 4294901760
        %271 = vmatpush1.msra.mxu0 %v270
        %272 = vmatprep.subr.mxu0 0.0
        %273 = vmatpush2.msra.mxu0 0.0
        %274 = vmatprep.subr.mxu0 0.0
        %275 = vmatpush2.msra.mxu0 0.0
        %276 = vmatprep.subr.mxu0 0.0
        %277 = vmatpush2.msra.mxu0 0.0
        %278 = vmatprep.subr.mxu0 0.0
        %279 = vmatpush2.msra.mxu0 0.0
        %280 = vmatprep.subr.mxu0 0.0
        %281 = vmatpush2.msra.mxu0 0.0
        %282 = vmatprep.subr.mxu0 0.0
        %283 = vmatpush2.msra.mxu0 0.0
        %284 = vmatprep.subr.mxu0 0.0
        %285 = vmatpush2.msra.mxu0 0.0
        %286 = vmatprep.subr.mxu0 0.0
        %287 = vmatpush2.msra.mxu0 0.0
        %288 = vmatprep.subr.mxu0 0.0
        %289 = vmatpush2.msra.mxu0 0.0
        %290 = vmatprep.subr.mxu0 0.0
        %291 = vmatpush2.msra.mxu0 0.0
        %292 = vmatprep.subr.mxu0 0.0
        %293 = vmatpush2.msra.mxu0 0.0
        %294 = vmatprep.subr.mxu0 0.0
        %295 = vmatpush2.msra.mxu0 0.0
        %296 = vmatprep.subr.mxu0 0.0
        %297 = vmatpush2.msra.mxu0 0.0
        %298 = vmatprep.subr.mxu0 0.0
        %299 = vmatpush2.msra.mxu0 0.0
        %300 = vmatprep.subr.mxu0 0.0
        %301 = vmatpush2.msra.mxu0 0.0
        %302 = vmatprep.subr.mxu0 0.0
        %303 = vmatpush2.msra.mxu0 0.0
        %304 = vmatprep.mubr.f32.mxu0 0.0
        %v305 = vand.u32 %v233, 4294901760
        %v306 = vsub.f32 %v233, %v305
        %v307 = vand.u32 %v306, 4294901760
        %v308 = vsub.f32 %v306, %v307
        %v309 = vand.u32 %v308, 4294901760
        %310 = vmatmul.mubr.f32.gmra.mxu0 %v309
        %v311 = vpop.f32.mrf.mxu0
        %v312 = vadd.f32 0.0, %v311
        %v313 = vpop.f32.mrf.mxu0
        %314 = vmatprep.mubr.f32.mxu0 0.0
        %v315 = vand.u32 %v236, 4294901760
        %v316 = vsub.f32 %v236, %v315
        %v317 = vand.u32 %v316, 4294901760
        %v318 = vsub.f32 %v316, %v317
        %v319 = vand.u32 %v318, 4294901760
        %320 = vmatmul.mubr.f32.gmra.mxu0 %v319
        %v321 = vpop.f32.mrf.mxu0
        %v322 = vadd.f32 0.0, %v321
        %v323 = vpop.f32.mrf.mxu0
        %324 = vdwg.mxu0
        %325 = vmatprep.subr.mxu0 0.0
        %326 = vmatpush1.msra.mxu0 0.0
        %327 = vmatprep.subr.mxu0 0.0
        %328 = vmatpush1.msra.mxu0 0.0
        %329 = vmatprep.subr.mxu0 0.0
        %330 = vmatpush1.msra.mxu0 0.0
        %331 = vmatprep.subr.mxu0 0.0
        %332 = vmatpush1.msra.mxu0 0.0
        %333 = vmatprep.subr.mxu0 0.0
        %334 = vmatpush1.msra.mxu0 0.0
        %335 = vmatprep.subr.mxu0 0.0
        %336 = vmatpush1.msra.mxu0 0.0
        %337 = vmatprep.subr.mxu0 0.0
        %338 = vmatpush1.msra.mxu0 0.0
        %339 = vmatprep.subr.mxu0 0.0
        %340 = vmatpush1.msra.mxu0 0.0
        %341 = vmatprep.subr.mxu0 0.0
        %342 = vmatpush1.msra.mxu0 0.0
        %343 = vmatprep.subr.mxu0 0.0
        %344 = vmatpush1.msra.mxu0 0.0
        %345 = vmatprep.subr.mxu0 0.0
        %346 = vmatpush1.msra.mxu0 0.0
        %347 = vmatprep.subr.mxu0 0.0
        %348 = vmatpush1.msra.mxu0 0.0
        %349 = vmatprep.subr.mxu0 0.0
        %350 = vmatpush1.msra.mxu0 0.0
        %351 = vmatprep.subr.mxu0 0.0
        %352 = vmatpush1.msra.mxu0 0.0
        %353 = vmatprep.subr.mxu0 0.0
        %v354 = vand.u32 %v210, 4294901760
        %v355 = vsub.f32 %v210, %v354
        %v356 = vand.u32 %v355, 4294901760
        %v357 = vsub.f32 %v355, %v356
        %v358 = vand.u32 %v357, 4294901760
        %359 = vmatpush1.msra.mxu0 %v358
        %360 = vmatprep.subr.mxu0 0.0
        %v361 = vand.u32 %v209, 4294901760
        %v362 = vsub.f32 %v209, %v361
        %v363 = vand.u32 %v362, 4294901760
        %v364 = vsub.f32 %v362, %v363
        %v365 = vand.u32 %v364, 4294901760
        %366 = vmatpush1.msra.mxu0 %v365
        %367 = vmatprep.subr.mxu0 0.0
        %368 = vmatpush2.msra.mxu0 0.0
        %369 = vmatprep.subr.mxu0 0.0
        %370 = vmatpush2.msra.mxu0 0.0
        %371 = vmatprep.subr.mxu0 0.0
        %372 = vmatpush2.msra.mxu0 0.0
        %373 = vmatprep.subr.mxu0 0.0
        %374 = vmatpush2.msra.mxu0 0.0
        %375 = vmatprep.subr.mxu0 0.0
        %376 = vmatpush2.msra.mxu0 0.0
        %377 = vmatprep.subr.mxu0 0.0
        %378 = vmatpush2.msra.mxu0 0.0
        %379 = vmatprep.subr.mxu0 0.0
        %380 = vmatpush2.msra.mxu0 0.0
        %381 = vmatprep.subr.mxu0 0.0
        %382 = vmatpush2.msra.mxu0 0.0
        %383 = vmatprep.subr.mxu0 0.0
        %384 = vmatpush2.msra.mxu0 0.0
        %385 = vmatprep.subr.mxu0 0.0
        %386 = vmatpush2.msra.mxu0 0.0
        %387 = vmatprep.subr.mxu0 0.0
        %388 = vmatpush2.msra.mxu0 0.0
        %389 = vmatprep.subr.mxu0 0.0
        %390 = vmatpush2.msra.mxu0 0.0
        %391 = vmatprep.subr.mxu0 0.0
        %392 = vmatpush2.msra.mxu0 0.0
        %393 = vmatprep.subr.mxu0 0.0
        %394 = vmatpush2.msra.mxu0 0.0
        %395 = vmatprep.subr.mxu0 0.0
        %396 = vmatpush2.msra.mxu0 0.0
        %397 = vmatprep.subr.mxu0 0.0
        %398 = vmatpush2.msra.mxu0 0.0
        %399 = vmatprep.mubr.f32.mxu0 0.0
        %v400 = vand.u32 %v233, 4294901760
        %401 = vmatmul.mubr.f32.gmra.mxu0 %v400
        %v402 = vpop.f32.mrf.mxu0
        %v403 = vadd.f32 %v312, %v402
        %v404 = vpop.f32.mrf.mxu0
        %405 = vmatprep.mubr.f32.mxu0 0.0
        %v406 = vand.u32 %v236, 4294901760
        %407 = vmatmul.mubr.f32.gmra.mxu0 %v406
        %v408 = vpop.f32.mrf.mxu0
        %v409 = vadd.f32 %v322, %v408
        %v410 = vpop.f32.mrf.mxu0
        %411 = vdwg.mxu0
        %412 = vmatprep.subr.mxu0 0.0
        %413 = vmatpush1.msra.mxu0 0.0
        %414 = vmatprep.subr.mxu0 0.0
        %415 = vmatpush1.msra.mxu0 0.0
        %416 = vmatprep.subr.mxu0 0.0
        %417 = vmatpush1.msra.mxu0 0.0
        %418 = vmatprep.subr.mxu0 0.0
        %419 = vmatpush1.msra.mxu0 0.0
        %420 = vmatprep.subr.mxu0 0.0
        %421 = vmatpush1.msra.mxu0 0.0
        %422 = vmatprep.subr.mxu0 0.0
        %423 = vmatpush1.msra.mxu0 0.0
        %424 = vmatprep.subr.mxu0 0.0
        %425 = vmatpush1.msra.mxu0 0.0
        %426 = vmatprep.subr.mxu0 0.0
        %427 = vmatpush1.msra.mxu0 0.0
        %428 = vmatprep.subr.mxu0 0.0
        %429 = vmatpush1.msra.mxu0 0.0
        %430 = vmatprep.subr.mxu0 0.0
        %431 = vmatpush1.msra.mxu0 0.0
        %432 = vmatprep.subr.mxu0 0.0
        %433 = vmatpush1.msra.mxu0 0.0
        %434 = vmatprep.subr.mxu0 0.0
        %435 = vmatpush1.msra.mxu0 0.0
        %436 = vmatprep.subr.mxu0 0.0
        %437 = vmatpush1.msra.mxu0 0.0
        %438 = vmatprep.subr.mxu0 0.0
        %439 = vmatpush1.msra.mxu0 0.0
        %440 = vmatprep.subr.mxu0 0.0
        %v441 = vand.u32 %v210, 4294901760
        %v442 = vsub.f32 %v210, %v441
        %443 = vmatpush1.msra.mxu0 %v442
        %444 = vmatprep.subr.mxu0 0.0
        %v445 = vand.u32 %v209, 4294901760
        %v446 = vsub.f32 %v209, %v445
        %447 = vmatpush1.msra.mxu0 %v446
        %448 = vmatprep.subr.mxu0 0.0
        %449 = vmatpush2.msra.mxu0 0.0
        %450 = vmatprep.subr.mxu0 0.0
        %451 = vmatpush2.msra.mxu0 0.0
        %452 = vmatprep.subr.mxu0 0.0
        %453 = vmatpush2.msra.mxu0 0.0
        %454 = vmatprep.subr.mxu0 0.0
        %455 = vmatpush2.msra.mxu0 0.0
        %456 = vmatprep.subr.mxu0 0.0
        %457 = vmatpush2.msra.mxu0 0.0
        %458 = vmatprep.subr.mxu0 0.0
        %459 = vmatpush2.msra.mxu0 0.0
        %460 = vmatprep.subr.mxu0 0.0
        %461 = vmatpush2.msra.mxu0 0.0
        %462 = vmatprep.subr.mxu0 0.0
        %463 = vmatpush2.msra.mxu0 0.0
        %464 = vmatprep.subr.mxu0 0.0
        %465 = vmatpush2.msra.mxu0 0.0
        %466 = vmatprep.subr.mxu0 0.0
        %467 = vmatpush2.msra.mxu0 0.0
        %468 = vmatprep.subr.mxu0 0.0
        %469 = vmatpush2.msra.mxu0 0.0
        %470 = vmatprep.subr.mxu0 0.0
        %471 = vmatpush2.msra.mxu0 0.0
        %472 = vmatprep.subr.mxu0 0.0
        %473 = vmatpush2.msra.mxu0 0.0
        %474 = vmatprep.subr.mxu0 0.0
        %475 = vmatpush2.msra.mxu0 0.0
        %476 = vmatprep.subr.mxu0 0.0
        %477 = vmatpush2.msra.mxu0 0.0
        %478 = vmatprep.subr.mxu0 0.0
        %479 = vmatpush2.msra.mxu0 0.0
        %480 = vmatprep.mubr.f32.mxu0 0.0
        %v481 = vand.u32 %v233, 4294901760
        %v482 = vsub.f32 %v233, %v481
        %483 = vmatmul.mubr.f32.gmra.mxu0 %v482
        %v484 = vpop.f32.mrf.mxu0
        %v485 = vadd.f32 %v403, %v484
        %v486 = vpop.f32.mrf.mxu0
        %487 = vmatprep.mubr.f32.mxu0 0.0
        %v488 = vand.u32 %v236, 4294901760
        %v489 = vsub.f32 %v236, %v488
        %490 = vmatmul.mubr.f32.gmra.mxu0 %v489
        %v491 = vpop.f32.mrf.mxu0
        %v492 = vadd.f32 %v409, %v491
        %v493 = vpop.f32.mrf.mxu0
        %494 = vdwg.mxu0
        %495 = vmatprep.subr.mxu0 0.0
        %496 = vmatpush1.msra.mxu0 0.0
        %497 = vmatprep.subr.mxu0 0.0
        %498 = vmatpush1.msra.mxu0 0.0
        %499 = vmatprep.subr.mxu0 0.0
        %500 = vmatpush1.msra.mxu0 0.0
        %501 = vmatprep.subr.mxu0 0.0
        %502 = vmatpush1.msra.mxu0 0.0
        %503 = vmatprep.subr.mxu0 0.0
        %504 = vmatpush1.msra.mxu0 0.0
        %505 = vmatprep.subr.mxu0 0.0
        %506 = vmatpush1.msra.mxu0 0.0
        %507 = vmatprep.subr.mxu0 0.0
        %508 = vmatpush1.msra.mxu0 0.0
        %509 = vmatprep.subr.mxu0 0.0
        %510 = vmatpush1.msra.mxu0 0.0
        %511 = vmatprep.subr.mxu0 0.0
        %512 = vmatpush1.msra.mxu0 0.0
        %513 = vmatprep.subr.mxu0 0.0
        %514 = vmatpush1.msra.mxu0 0.0
        %515 = vmatprep.subr.mxu0 0.0
        %516 = vmatpush1.msra.mxu0 0.0
        %517 = vmatprep.subr.mxu0 0.0
        %518 = vmatpush1.msra.mxu0 0.0
        %519 = vmatprep.subr.mxu0 0.0
        %520 = vmatpush1.msra.mxu0 0.0
        %521 = vmatprep.subr.mxu0 0.0
        %522 = vmatpush1.msra.mxu0 0.0
        %523 = vmatprep.subr.mxu0 0.0
        %v524 = vand.u32 %v210, 4294901760
        %525 = vmatpush1.msra.mxu0 %v524
        %526 = vmatprep.subr.mxu0 0.0
        %v527 = vand.u32 %v209, 4294901760
        %528 = vmatpush1.msra.mxu0 %v527
        %529 = vmatprep.subr.mxu0 0.0
        %530 = vmatpush2.msra.mxu0 0.0
        %531 = vmatprep.subr.mxu0 0.0
        %532 = vmatpush2.msra.mxu0 0.0
        %533 = vmatprep.subr.mxu0 0.0
        %534 = vmatpush2.msra.mxu0 0.0
        %535 = vmatprep.subr.mxu0 0.0
        %536 = vmatpush2.msra.mxu0 0.0
        %537 = vmatprep.subr.mxu0 0.0
        %538 = vmatpush2.msra.mxu0 0.0
        %539 = vmatprep.subr.mxu0 0.0
        %540 = vmatpush2.msra.mxu0 0.0
        %541 = vmatprep.subr.mxu0 0.0
        %542 = vmatpush2.msra.mxu0 0.0
        %543 = vmatprep.subr.mxu0 0.0
        %544 = vmatpush2.msra.mxu0 0.0
        %545 = vmatprep.subr.mxu0 0.0
        %546 = vmatpush2.msra.mxu0 0.0
        %547 = vmatprep.subr.mxu0 0.0
        %548 = vmatpush2.msra.mxu0 0.0
        %549 = vmatprep.subr.mxu0 0.0
        %550 = vmatpush2.msra.mxu0 0.0
        %551 = vmatprep.subr.mxu0 0.0
        %552 = vmatpush2.msra.mxu0 0.0
        %553 = vmatprep.subr.mxu0 0.0
        %554 = vmatpush2.msra.mxu0 0.0
        %555 = vmatprep.subr.mxu0 0.0
        %556 = vmatpush2.msra.mxu0 0.0
        %557 = vmatprep.subr.mxu0 0.0
        %558 = vmatpush2.msra.mxu0 0.0
        %559 = vmatprep.subr.mxu0 0.0
        %560 = vmatpush2.msra.mxu0 0.0
        %561 = vmatprep.mubr.f32.mxu0 0.0
        %v562 = vand.u32 %v233, 4294901760
        %v563 = vsub.f32 %v233, %v562
        %v564 = vand.u32 %v563, 4294901760
        %565 = vmatmul.mubr.f32.gmra.mxu0 %v564
        %v566 = vpop.f32.mrf.mxu0
        %v567 = vadd.f32 %v485, %v566
        %v568 = vpop.f32.mrf.mxu0
        %569 = vmatprep.mubr.f32.mxu0 0.0
        %v570 = vand.u32 %v236, 4294901760
        %v571 = vsub.f32 %v236, %v570
        %v572 = vand.u32 %v571, 4294901760
        %573 = vmatmul.mubr.f32.gmra.mxu0 %v572
        %v574 = vpop.f32.mrf.mxu0
        %v575 = vadd.f32 %v492, %v574
        %v576 = vpop.f32.mrf.mxu0
        %577 = vdwg.mxu0
        %578 = vmatprep.subr.mxu0 0.0
        %579 = vmatpush1.msra.mxu0 0.0
        %580 = vmatprep.subr.mxu0 0.0
        %581 = vmatpush1.msra.mxu0 0.0
        %582 = vmatprep.subr.mxu0 0.0
        %583 = vmatpush1.msra.mxu0 0.0
        %584 = vmatprep.subr.mxu0 0.0
        %585 = vmatpush1.msra.mxu0 0.0
        %586 = vmatprep.subr.mxu0 0.0
        %587 = vmatpush1.msra.mxu0 0.0
        %588 = vmatprep.subr.mxu0 0.0
        %589 = vmatpush1.msra.mxu0 0.0
        %590 = vmatprep.subr.mxu0 0.0
        %591 = vmatpush1.msra.mxu0 0.0
        %592 = vmatprep.subr.mxu0 0.0
        %593 = vmatpush1.msra.mxu0 0.0
        %594 = vmatprep.subr.mxu0 0.0
        %595 = vmatpush1.msra.mxu0 0.0
        %596 = vmatprep.subr.mxu0 0.0
        %597 = vmatpush1.msra.mxu0 0.0
        %598 = vmatprep.subr.mxu0 0.0
        %599 = vmatpush1.msra.mxu0 0.0
        %600 = vmatprep.subr.mxu0 0.0
        %601 = vmatpush1.msra.mxu0 0.0
        %602 = vmatprep.subr.mxu0 0.0
        %603 = vmatpush1.msra.mxu0 0.0
        %604 = vmatprep.subr.mxu0 0.0
        %605 = vmatpush1.msra.mxu0 0.0
        %606 = vmatprep.subr.mxu0 0.0
        %v607 = vand.u32 %v210, 4294901760
        %v608 = vsub.f32 %v210, %v607
        %v609 = vand.u32 %v608, 4294901760
        %610 = vmatpush1.msra.mxu0 %v609
        %611 = vmatprep.subr.mxu0 0.0
        %v612 = vand.u32 %v209, 4294901760
        %v613 = vsub.f32 %v209, %v612
        %v614 = vand.u32 %v613, 4294901760
        %615 = vmatpush1.msra.mxu0 %v614
        %616 = vmatprep.subr.mxu0 0.0
        %617 = vmatpush2.msra.mxu0 0.0
        %618 = vmatprep.subr.mxu0 0.0
        %619 = vmatpush2.msra.mxu0 0.0
        %620 = vmatprep.subr.mxu0 0.0
        %621 = vmatpush2.msra.mxu0 0.0
        %622 = vmatprep.subr.mxu0 0.0
        %623 = vmatpush2.msra.mxu0 0.0
        %624 = vmatprep.subr.mxu0 0.0
        %625 = vmatpush2.msra.mxu0 0.0
        %626 = vmatprep.subr.mxu0 0.0
        %627 = vmatpush2.msra.mxu0 0.0
        %628 = vmatprep.subr.mxu0 0.0
        %629 = vmatpush2.msra.mxu0 0.0
        %630 = vmatprep.subr.mxu0 0.0
        %631 = vmatpush2.msra.mxu0 0.0
        %632 = vmatprep.subr.mxu0 0.0
        %633 = vmatpush2.msra.mxu0 0.0
        %634 = vmatprep.subr.mxu0 0.0
        %635 = vmatpush2.msra.mxu0 0.0
        %636 = vmatprep.subr.mxu0 0.0
        %637 = vmatpush2.msra.mxu0 0.0
        %638 = vmatprep.subr.mxu0 0.0
        %639 = vmatpush2.msra.mxu0 0.0
        %640 = vmatprep.subr.mxu0 0.0
        %641 = vmatpush2.msra.mxu0 0.0
        %642 = vmatprep.subr.mxu0 0.0
        %643 = vmatpush2.msra.mxu0 0.0
        %644 = vmatprep.subr.mxu0 0.0
        %645 = vmatpush2.msra.mxu0 0.0
        %646 = vmatprep.subr.mxu0 0.0
        %647 = vmatpush2.msra.mxu0 0.0
        %648 = vmatprep.mubr.f32.mxu0 0.0
        %v649 = vand.u32 %v233, 4294901760
        %650 = vmatmul.mubr.f32.gmra.mxu0 %v649
        %v651 = vpop.f32.mrf.mxu0
        %v652 = vadd.f32 %v567, %v651
        %v653 = vpop.f32.mrf.mxu0
        %654 = vmatprep.mubr.f32.mxu0 0.0
        %v655 = vand.u32 %v236, 4294901760
        %656 = vmatmul.mubr.f32.gmra.mxu0 %v655
        %v657 = vpop.f32.mrf.mxu0
        %v658 = vadd.f32 %v575, %v657
        %v659 = vpop.f32.mrf.mxu0
        %660 = vdwg.mxu0
        %661 = vmatprep.subr.mxu0 0.0
        %662 = vmatpush1.msra.mxu0 0.0
        %663 = vmatprep.subr.mxu0 0.0
        %664 = vmatpush1.msra.mxu0 0.0
        %665 = vmatprep.subr.mxu0 0.0
        %666 = vmatpush1.msra.mxu0 0.0
        %667 = vmatprep.subr.mxu0 0.0
        %668 = vmatpush1.msra.mxu0 0.0
        %669 = vmatprep.subr.mxu0 0.0
        %670 = vmatpush1.msra.mxu0 0.0
        %671 = vmatprep.subr.mxu0 0.0
        %672 = vmatpush1.msra.mxu0 0.0
        %673 = vmatprep.subr.mxu0 0.0
        %674 = vmatpush1.msra.mxu0 0.0
        %675 = vmatprep.subr.mxu0 0.0
        %676 = vmatpush1.msra.mxu0 0.0
        %677 = vmatprep.subr.mxu0 0.0
        %678 = vmatpush1.msra.mxu0 0.0
        %679 = vmatprep.subr.mxu0 0.0
        %680 = vmatpush1.msra.mxu0 0.0
        %681 = vmatprep.subr.mxu0 0.0
        %682 = vmatpush1.msra.mxu0 0.0
        %683 = vmatprep.subr.mxu0 0.0
        %684 = vmatpush1.msra.mxu0 0.0
        %685 = vmatprep.subr.mxu0 0.0
        %686 = vmatpush1.msra.mxu0 0.0
        %687 = vmatprep.subr.mxu0 0.0
        %688 = vmatpush1.msra.mxu0 0.0
        %689 = vmatprep.subr.mxu0 0.0
        %v690 = vand.u32 %v210, 4294901760
        %691 = vmatpush1.msra.mxu0 %v690
        %692 = vmatprep.subr.mxu0 0.0
        %v693 = vand.u32 %v209, 4294901760
        %694 = vmatpush1.msra.mxu0 %v693
        %695 = vmatprep.subr.mxu0 0.0
        %696 = vmatpush2.msra.mxu0 0.0
        %697 = vmatprep.subr.mxu0 0.0
        %698 = vmatpush2.msra.mxu0 0.0
        %699 = vmatprep.subr.mxu0 0.0
        %700 = vmatpush2.msra.mxu0 0.0
        %701 = vmatprep.subr.mxu0 0.0
        %702 = vmatpush2.msra.mxu0 0.0
        %703 = vmatprep.subr.mxu0 0.0
        %704 = vmatpush2.msra.mxu0 0.0
        %705 = vmatprep.subr.mxu0 0.0
        %706 = vmatpush2.msra.mxu0 0.0
        %707 = vmatprep.subr.mxu0 0.0
        %708 = vmatpush2.msra.mxu0 0.0
        %709 = vmatprep.subr.mxu0 0.0
        %710 = vmatpush2.msra.mxu0 0.0
        %711 = vmatprep.subr.mxu0 0.0
        %712 = vmatpush2.msra.mxu0 0.0
        %713 = vmatprep.subr.mxu0 0.0
        %714 = vmatpush2.msra.mxu0 0.0
        %715 = vmatprep.subr.mxu0 0.0
        %716 = vmatpush2.msra.mxu0 0.0
        %717 = vmatprep.subr.mxu0 0.0
        %718 = vmatpush2.msra.mxu0 0.0
        %719 = vmatprep.subr.mxu0 0.0
        %720 = vmatpush2.msra.mxu0 0.0
        %721 = vmatprep.subr.mxu0 0.0
        %722 = vmatpush2.msra.mxu0 0.0
        %723 = vmatprep.subr.mxu0 0.0
        %724 = vmatpush2.msra.mxu0 0.0
        %725 = vmatprep.subr.mxu0 0.0
        %726 = vmatpush2.msra.mxu0 0.0
        %727 = vmatprep.mubr.f32.mxu0 0.0
        %v728 = vand.u32 %v233, 4294901760
        %729 = vmatmul.mubr.f32.gmra.mxu0 %v728
        %v730 = vpop.f32.mrf.mxu0
        %v731 = vadd.f32 %v652, %v730
        %v732 = vpop.f32.mrf.mxu0
        %733 = vmatprep.mubr.f32.mxu0 0.0
        %v734 = vand.u32 %v236, 4294901760
        %735 = vmatmul.mubr.f32.gmra.mxu0 %v734
        %v736 = vpop.f32.mrf.mxu0
        %v737 = vadd.f32 %v658, %v736
        %v738 = vpop.f32.mrf.mxu0
        %739 = vdwg.mxu0
        %742 = vrot.lane.b32.xlu0 %v229, 112
        %v743 = vpop.permute.xlu0 %742
        %744 = vrot.lane.b32.xlu0 %v230, 112
        %v745 = vpop.permute.xlu0 %744
        %v746 = vsel %vm231, %v743, 0
        %v748 = vsel %vm231, %v745, 0
        %750 = vmatprep.subr.mxu0 0.0
        %751 = vmatpush1.msra.mxu0 0.0
        %752 = vmatprep.subr.mxu0 0.0
        %753 = vmatpush1.msra.mxu0 0.0
        %754 = vmatprep.subr.mxu0 0.0
        %755 = vmatpush1.msra.mxu0 0.0
        %756 = vmatprep.subr.mxu0 0.0
        %757 = vmatpush1.msra.mxu0 0.0
        %758 = vmatprep.subr.mxu0 0.0
        %759 = vmatpush1.msra.mxu0 0.0
        %760 = vmatprep.subr.mxu0 0.0
        %761 = vmatpush1.msra.mxu0 0.0
        %762 = vmatprep.subr.mxu0 0.0
        %763 = vmatpush1.msra.mxu0 0.0
        %764 = vmatprep.subr.mxu0 0.0
        %765 = vmatpush1.msra.mxu0 0.0
        %766 = vmatprep.subr.mxu0 0.0
        %767 = vmatpush1.msra.mxu0 0.0
        %768 = vmatprep.subr.mxu0 0.0
        %769 = vmatpush1.msra.mxu0 0.0
        %770 = vmatprep.subr.mxu0 0.0
        %771 = vmatpush1.msra.mxu0 0.0
        %772 = vmatprep.subr.mxu0 0.0
        %773 = vmatpush1.msra.mxu0 0.0
        %774 = vmatprep.subr.mxu0 0.0
        %775 = vmatpush1.msra.mxu0 0.0
        %776 = vmatprep.subr.mxu0 0.0
        %777 = vmatpush1.msra.mxu0 0.0
        %778 = vmatprep.subr.mxu0 0.0
        %v779 = vand.u32 %v210, 4294901760
        %780 = vmatpush1.msra.mxu0 %v779
        %781 = vmatprep.subr.mxu0 0.0
        %v782 = vand.u32 %v209, 4294901760
        %783 = vmatpush1.msra.mxu0 %v782
        %784 = vmatprep.subr.mxu0 0.0
        %785 = vmatpush2.msra.mxu0 0.0
        %786 = vmatprep.subr.mxu0 0.0
        %787 = vmatpush2.msra.mxu0 0.0
        %788 = vmatprep.subr.mxu0 0.0
        %789 = vmatpush2.msra.mxu0 0.0
        %790 = vmatprep.subr.mxu0 0.0
        %791 = vmatpush2.msra.mxu0 0.0
        %792 = vmatprep.subr.mxu0 0.0
        %793 = vmatpush2.msra.mxu0 0.0
        %794 = vmatprep.subr.mxu0 0.0
        %795 = vmatpush2.msra.mxu0 0.0
        %796 = vmatprep.subr.mxu0 0.0
        %797 = vmatpush2.msra.mxu0 0.0
        %798 = vmatprep.subr.mxu0 0.0
        %799 = vmatpush2.msra.mxu0 0.0
        %800 = vmatprep.subr.mxu0 0.0
        %801 = vmatpush2.msra.mxu0 0.0
        %802 = vmatprep.subr.mxu0 0.0
        %803 = vmatpush2.msra.mxu0 0.0
        %804 = vmatprep.subr.mxu0 0.0
        %805 = vmatpush2.msra.mxu0 0.0
        %806 = vmatprep.subr.mxu0 0.0
        %807 = vmatpush2.msra.mxu0 0.0
        %808 = vmatprep.subr.mxu0 0.0
        %809 = vmatpush2.msra.mxu0 0.0
        %810 = vmatprep.subr.mxu0 0.0
        %811 = vmatpush2.msra.mxu0 0.0
        %812 = vmatprep.subr.mxu0 0.0
        %813 = vmatpush2.msra.mxu0 0.0
        %814 = vmatprep.subr.mxu0 0.0
        %815 = vmatpush2.msra.mxu0 0.0
        %816 = vmatprep.mubr.f32.mxu0 0.0
        %v817 = vand.u32 %v746, 4294901760
        %v818 = vsub.f32 %v746, %v817
        %v819 = vand.u32 %v818, 4294901760
        %v820 = vsub.f32 %v818, %v819
        %v821 = vand.u32 %v820, 4294901760
        %822 = vmatmul.mubr.f32.gmra.mxu0 %v821
        %v823 = vpop.f32.mrf.mxu0
        %v824 = vadd.f32 0.0, %v823
        %v825 = vpop.f32.mrf.mxu0
        %826 = vmatprep.mubr.f32.mxu0 0.0
        %v827 = vand.u32 %v748, 4294901760
        %v828 = vsub.f32 %v748, %v827
        %v829 = vand.u32 %v828, 4294901760
        %v830 = vsub.f32 %v828, %v829
        %v831 = vand.u32 %v830, 4294901760
        %832 = vmatmul.mubr.f32.gmra.mxu0 %v831
        %v833 = vpop.f32.mrf.mxu0
        %v834 = vadd.f32 0.0, %v833
        %v835 = vpop.f32.mrf.mxu0
        %836 = vdwg.mxu0
        %837 = vmatprep.subr.mxu0 0.0
        %838 = vmatpush1.msra.mxu0 0.0
        %839 = vmatprep.subr.mxu0 0.0
        %840 = vmatpush1.msra.mxu0 0.0
        %841 = vmatprep.subr.mxu0 0.0
        %842 = vmatpush1.msra.mxu0 0.0
        %843 = vmatprep.subr.mxu0 0.0
        %844 = vmatpush1.msra.mxu0 0.0
        %845 = vmatprep.subr.mxu0 0.0
        %846 = vmatpush1.msra.mxu0 0.0
        %847 = vmatprep.subr.mxu0 0.0
        %848 = vmatpush1.msra.mxu0 0.0
        %849 = vmatprep.subr.mxu0 0.0
        %850 = vmatpush1.msra.mxu0 0.0
        %851 = vmatprep.subr.mxu0 0.0
        %852 = vmatpush1.msra.mxu0 0.0
        %853 = vmatprep.subr.mxu0 0.0
        %854 = vmatpush1.msra.mxu0 0.0
        %855 = vmatprep.subr.mxu0 0.0
        %856 = vmatpush1.msra.mxu0 0.0
        %857 = vmatprep.subr.mxu0 0.0
        %858 = vmatpush1.msra.mxu0 0.0
        %859 = vmatprep.subr.mxu0 0.0
        %860 = vmatpush1.msra.mxu0 0.0
        %861 = vmatprep.subr.mxu0 0.0
        %862 = vmatpush1.msra.mxu0 0.0
        %863 = vmatprep.subr.mxu0 0.0
        %864 = vmatpush1.msra.mxu0 0.0
        %865 = vmatprep.subr.mxu0 0.0
        %v866 = vand.u32 %v210, 4294901760
        %v867 = vsub.f32 %v210, %v866
        %v868 = vand.u32 %v867, 4294901760
        %v869 = vsub.f32 %v867, %v868
        %v870 = vand.u32 %v869, 4294901760
        %871 = vmatpush1.msra.mxu0 %v870
        %872 = vmatprep.subr.mxu0 0.0
        %v873 = vand.u32 %v209, 4294901760
        %v874 = vsub.f32 %v209, %v873
        %v875 = vand.u32 %v874, 4294901760
        %v876 = vsub.f32 %v874, %v875
        %v877 = vand.u32 %v876, 4294901760
        %878 = vmatpush1.msra.mxu0 %v877
        %879 = vmatprep.subr.mxu0 0.0
        %880 = vmatpush2.msra.mxu0 0.0
        %881 = vmatprep.subr.mxu0 0.0
        %882 = vmatpush2.msra.mxu0 0.0
        %883 = vmatprep.subr.mxu0 0.0
        %884 = vmatpush2.msra.mxu0 0.0
        %885 = vmatprep.subr.mxu0 0.0
        %886 = vmatpush2.msra.mxu0 0.0
        %887 = vmatprep.subr.mxu0 0.0
        %888 = vmatpush2.msra.mxu0 0.0
        %889 = vmatprep.subr.mxu0 0.0
        %890 = vmatpush2.msra.mxu0 0.0
        %891 = vmatprep.subr.mxu0 0.0
        %892 = vmatpush2.msra.mxu0 0.0
        %893 = vmatprep.subr.mxu0 0.0
        %894 = vmatpush2.msra.mxu0 0.0
        %895 = vmatprep.subr.mxu0 0.0
        %896 = vmatpush2.msra.mxu0 0.0
        %897 = vmatprep.subr.mxu0 0.0
        %898 = vmatpush2.msra.mxu0 0.0
        %899 = vmatprep.subr.mxu0 0.0
        %900 = vmatpush2.msra.mxu0 0.0
        %901 = vmatprep.subr.mxu0 0.0
        %902 = vmatpush2.msra.mxu0 0.0
        %903 = vmatprep.subr.mxu0 0.0
        %904 = vmatpush2.msra.mxu0 0.0
        %905 = vmatprep.subr.mxu0 0.0
        %906 = vmatpush2.msra.mxu0 0.0
        %907 = vmatprep.subr.mxu0 0.0
        %908 = vmatpush2.msra.mxu0 0.0
        %909 = vmatprep.subr.mxu0 0.0
        %910 = vmatpush2.msra.mxu0 0.0
        %911 = vmatprep.mubr.f32.mxu0 0.0
        %v912 = vand.u32 %v746, 4294901760
        %913 = vmatmul.mubr.f32.gmra.mxu0 %v912
        %v914 = vpop.f32.mrf.mxu0
        %v915 = vadd.f32 %v824, %v914
        %v916 = vpop.f32.mrf.mxu0
        %917 = vmatprep.mubr.f32.mxu0 0.0
        %v918 = vand.u32 %v748, 4294901760
        %919 = vmatmul.mubr.f32.gmra.mxu0 %v918
        %v920 = vpop.f32.mrf.mxu0
        %v921 = vadd.f32 %v834, %v920
        %v922 = vpop.f32.mrf.mxu0
        %923 = vdwg.mxu0
        %924 = vmatprep.subr.mxu0 0.0
        %925 = vmatpush1.msra.mxu0 0.0
        %926 = vmatprep.subr.mxu0 0.0
        %927 = vmatpush1.msra.mxu0 0.0
        %928 = vmatprep.subr.mxu0 0.0
        %929 = vmatpush1.msra.mxu0 0.0
        %930 = vmatprep.subr.mxu0 0.0
        %931 = vmatpush1.msra.mxu0 0.0
        %932 = vmatprep.subr.mxu0 0.0
        %933 = vmatpush1.msra.mxu0 0.0
        %934 = vmatprep.subr.mxu0 0.0
        %935 = vmatpush1.msra.mxu0 0.0
        %936 = vmatprep.subr.mxu0 0.0
        %937 = vmatpush1.msra.mxu0 0.0
        %938 = vmatprep.subr.mxu0 0.0
        %939 = vmatpush1.msra.mxu0 0.0
        %940 = vmatprep.subr.mxu0 0.0
        %941 = vmatpush1.msra.mxu0 0.0
        %942 = vmatprep.subr.mxu0 0.0
        %943 = vmatpush1.msra.mxu0 0.0
        %944 = vmatprep.subr.mxu0 0.0
        %945 = vmatpush1.msra.mxu0 0.0
        %946 = vmatprep.subr.mxu0 0.0
        %947 = vmatpush1.msra.mxu0 0.0
        %948 = vmatprep.subr.mxu0 0.0
        %949 = vmatpush1.msra.mxu0 0.0
        %950 = vmatprep.subr.mxu0 0.0
        %951 = vmatpush1.msra.mxu0 0.0
        %952 = vmatprep.subr.mxu0 0.0
        %v953 = vand.u32 %v210, 4294901760
        %v954 = vsub.f32 %v210, %v953
        %955 = vmatpush1.msra.mxu0 %v954
        %956 = vmatprep.subr.mxu0 0.0
        %v957 = vand.u32 %v209, 4294901760
        %v958 = vsub.f32 %v209, %v957
        %959 = vmatpush1.msra.mxu0 %v958
        %960 = vmatprep.subr.mxu0 0.0
        %961 = vmatpush2.msra.mxu0 0.0
        %962 = vmatprep.subr.mxu0 0.0
        %963 = vmatpush2.msra.mxu0 0.0
        %964 = vmatprep.subr.mxu0 0.0
        %965 = vmatpush2.msra.mxu0 0.0
        %966 = vmatprep.subr.mxu0 0.0
        %967 = vmatpush2.msra.mxu0 0.0
        %968 = vmatprep.subr.mxu0 0.0
        %969 = vmatpush2.msra.mxu0 0.0
        %970 = vmatprep.subr.mxu0 0.0
        %971 = vmatpush2.msra.mxu0 0.0
        %972 = vmatprep.subr.mxu0 0.0
        %973 = vmatpush2.msra.mxu0 0.0
        %974 = vmatprep.subr.mxu0 0.0
        %975 = vmatpush2.msra.mxu0 0.0
        %976 = vmatprep.subr.mxu0 0.0
        %977 = vmatpush2.msra.mxu0 0.0
        %978 = vmatprep.subr.mxu0 0.0
        %979 = vmatpush2.msra.mxu0 0.0
        %980 = vmatprep.subr.mxu0 0.0
        %981 = vmatpush2.msra.mxu0 0.0
        %982 = vmatprep.subr.mxu0 0.0
        %983 = vmatpush2.msra.mxu0 0.0
        %984 = vmatprep.subr.mxu0 0.0
        %985 = vmatpush2.msra.mxu0 0.0
        %986 = vmatprep.subr.mxu0 0.0
        %987 = vmatpush2.msra.mxu0 0.0
        %988 = vmatprep.subr.mxu0 0.0
        %989 = vmatpush2.msra.mxu0 0.0
        %990 = vmatprep.subr.mxu0 0.0
        %991 = vmatpush2.msra.mxu0 0.0
        %992 = vmatprep.mubr.f32.mxu0 0.0
        %v993 = vand.u32 %v746, 4294901760
        %v994 = vsub.f32 %v746, %v993
        %995 = vmatmul.mubr.f32.gmra.mxu0 %v994
        %v996 = vpop.f32.mrf.mxu0
        %v997 = vadd.f32 %v915, %v996
        %v998 = vpop.f32.mrf.mxu0
        %999 = vmatprep.mubr.f32.mxu0 0.0
        %v1000 = vand.u32 %v748, 4294901760
        %v1001 = vsub.f32 %v748, %v1000
        %1002 = vmatmul.mubr.f32.gmra.mxu0 %v1001
        %v1003 = vpop.f32.mrf.mxu0
        %v1004 = vadd.f32 %v921, %v1003
        %v1005 = vpop.f32.mrf.mxu0
        %1006 = vdwg.mxu0
        %1007 = vmatprep.subr.mxu0 0.0
        %1008 = vmatpush1.msra.mxu0 0.0
        %1009 = vmatprep.subr.mxu0 0.0
        %1010 = vmatpush1.msra.mxu0 0.0
        %1011 = vmatprep.subr.mxu0 0.0
        %1012 = vmatpush1.msra.mxu0 0.0
        %1013 = vmatprep.subr.mxu0 0.0
        %1014 = vmatpush1.msra.mxu0 0.0
        %1015 = vmatprep.subr.mxu0 0.0
        %1016 = vmatpush1.msra.mxu0 0.0
        %1017 = vmatprep.subr.mxu0 0.0
        %1018 = vmatpush1.msra.mxu0 0.0
        %1019 = vmatprep.subr.mxu0 0.0
        %1020 = vmatpush1.msra.mxu0 0.0
        %1021 = vmatprep.subr.mxu0 0.0
        %1022 = vmatpush1.msra.mxu0 0.0
        %1023 = vmatprep.subr.mxu0 0.0
        %1024 = vmatpush1.msra.mxu0 0.0
        %1025 = vmatprep.subr.mxu0 0.0
        %1026 = vmatpush1.msra.mxu0 0.0
        %1027 = vmatprep.subr.mxu0 0.0
        %1028 = vmatpush1.msra.mxu0 0.0
        %1029 = vmatprep.subr.mxu0 0.0
        %1030 = vmatpush1.msra.mxu0 0.0
        %1031 = vmatprep.subr.mxu0 0.0
        %1032 = vmatpush1.msra.mxu0 0.0
        %1033 = vmatprep.subr.mxu0 0.0
        %1034 = vmatpush1.msra.mxu0 0.0
        %1035 = vmatprep.subr.mxu0 0.0
        %v1036 = vand.u32 %v210, 4294901760
        %1037 = vmatpush1.msra.mxu0 %v1036
        %1038 = vmatprep.subr.mxu0 0.0
        %v1039 = vand.u32 %v209, 4294901760
        %1040 = vmatpush1.msra.mxu0 %v1039
        %1041 = vmatprep.subr.mxu0 0.0
        %1042 = vmatpush2.msra.mxu0 0.0
        %1043 = vmatprep.subr.mxu0 0.0
        %1044 = vmatpush2.msra.mxu0 0.0
        %1045 = vmatprep.subr.mxu0 0.0
        %1046 = vmatpush2.msra.mxu0 0.0
        %1047 = vmatprep.subr.mxu0 0.0
        %1048 = vmatpush2.msra.mxu0 0.0
        %1049 = vmatprep.subr.mxu0 0.0
        %1050 = vmatpush2.msra.mxu0 0.0
        %1051 = vmatprep.subr.mxu0 0.0
        %1052 = vmatpush2.msra.mxu0 0.0
        %1053 = vmatprep.subr.mxu0 0.0
        %1054 = vmatpush2.msra.mxu0 0.0
        %1055 = vmatprep.subr.mxu0 0.0
        %1056 = vmatpush2.msra.mxu0 0.0
        %1057 = vmatprep.subr.mxu0 0.0
        %1058 = vmatpush2.msra.mxu0 0.0
        %1059 = vmatprep.subr.mxu0 0.0
        %1060 = vmatpush2.msra.mxu0 0.0
        %1061 = vmatprep.subr.mxu0 0.0
        %1062 = vmatpush2.msra.mxu0 0.0
        %1063 = vmatprep.subr.mxu0 0.0
        %1064 = vmatpush2.msra.mxu0 0.0
        %1065 = vmatprep.subr.mxu0 0.0
        %1066 = vmatpush2.msra.mxu0 0.0
        %1067 = vmatprep.subr.mxu0 0.0
        %1068 = vmatpush2.msra.mxu0 0.0
        %1069 = vmatprep.subr.mxu0 0.0
        %1070 = vmatpush2.msra.mxu0 0.0
        %1071 = vmatprep.subr.mxu0 0.0
        %1072 = vmatpush2.msra.mxu0 0.0
        %1073 = vmatprep.mubr.f32.mxu0 0.0
        %v1074 = vand.u32 %v746, 4294901760
        %v1075 = vsub.f32 %v746, %v1074
        %v1076 = vand.u32 %v1075, 4294901760
        %1077 = vmatmul.mubr.f32.gmra.mxu0 %v1076
        %v1078 = vpop.f32.mrf.mxu0
        %v1079 = vadd.f32 %v997, %v1078
        %v1080 = vpop.f32.mrf.mxu0
        %1081 = vmatprep.mubr.f32.mxu0 0.0
        %v1082 = vand.u32 %v748, 4294901760
        %v1083 = vsub.f32 %v748, %v1082
        %v1084 = vand.u32 %v1083, 4294901760
        %1085 = vmatmul.mubr.f32.gmra.mxu0 %v1084
        %v1086 = vpop.f32.mrf.mxu0
        %v1087 = vadd.f32 %v1004, %v1086
        %v1088 = vpop.f32.mrf.mxu0
        %1089 = vdwg.mxu0
        %1090 = vmatprep.subr.mxu0 0.0
        %1091 = vmatpush1.msra.mxu0 0.0
        %1092 = vmatprep.subr.mxu0 0.0
        %1093 = vmatpush1.msra.mxu0 0.0
        %1094 = vmatprep.subr.mxu0 0.0
        %1095 = vmatpush1.msra.mxu0 0.0
        %1096 = vmatprep.subr.mxu0 0.0
        %1097 = vmatpush1.msra.mxu0 0.0
        %1098 = vmatprep.subr.mxu0 0.0
        %1099 = vmatpush1.msra.mxu0 0.0
        %1100 = vmatprep.subr.mxu0 0.0
        %1101 = vmatpush1.msra.mxu0 0.0
        %1102 = vmatprep.subr.mxu0 0.0
        %1103 = vmatpush1.msra.mxu0 0.0
        %1104 = vmatprep.subr.mxu0 0.0
        %1105 = vmatpush1.msra.mxu0 0.0
        %1106 = vmatprep.subr.mxu0 0.0
        %1107 = vmatpush1.msra.mxu0 0.0
        %1108 = vmatprep.subr.mxu0 0.0
        %1109 = vmatpush1.msra.mxu0 0.0
        %1110 = vmatprep.subr.mxu0 0.0
        %1111 = vmatpush1.msra.mxu0 0.0
        %1112 = vmatprep.subr.mxu0 0.0
        %1113 = vmatpush1.msra.mxu0 0.0
        %1114 = vmatprep.subr.mxu0 0.0
        %1115 = vmatpush1.msra.mxu0 0.0
        %1116 = vmatprep.subr.mxu0 0.0
        %1117 = vmatpush1.msra.mxu0 0.0
        %1118 = vmatprep.subr.mxu0 0.0
        %v1119 = vand.u32 %v210, 4294901760
        %v1120 = vsub.f32 %v210, %v1119
        %v1121 = vand.u32 %v1120, 4294901760
        %1122 = vmatpush1.msra.mxu0 %v1121
        %1123 = vmatprep.subr.mxu0 0.0
        %v1124 = vand.u32 %v209, 4294901760
        %v1125 = vsub.f32 %v209, %v1124
        %v1126 = vand.u32 %v1125, 4294901760
        %1127 = vmatpush1.msra.mxu0 %v1126
        %1128 = vmatprep.subr.mxu0 0.0
        %1129 = vmatpush2.msra.mxu0 0.0
        %1130 = vmatprep.subr.mxu0 0.0
        %1131 = vmatpush2.msra.mxu0 0.0
        %1132 = vmatprep.subr.mxu0 0.0
        %1133 = vmatpush2.msra.mxu0 0.0
        %1134 = vmatprep.subr.mxu0 0.0
        %1135 = vmatpush2.msra.mxu0 0.0
        %1136 = vmatprep.subr.mxu0 0.0
        %1137 = vmatpush2.msra.mxu0 0.0
        %1138 = vmatprep.subr.mxu0 0.0
        %1139 = vmatpush2.msra.mxu0 0.0
        %1140 = vmatprep.subr.mxu0 0.0
        %1141 = vmatpush2.msra.mxu0 0.0
        %1142 = vmatprep.subr.mxu0 0.0
        %1143 = vmatpush2.msra.mxu0 0.0
        %1144 = vmatprep.subr.mxu0 0.0
        %1145 = vmatpush2.msra.mxu0 0.0
        %1146 = vmatprep.subr.mxu0 0.0
        %1147 = vmatpush2.msra.mxu0 0.0
        %1148 = vmatprep.subr.mxu0 0.0
        %1149 = vmatpush2.msra.mxu0 0.0
        %1150 = vmatprep.subr.mxu0 0.0
        %1151 = vmatpush2.msra.mxu0 0.0
        %1152 = vmatprep.subr.mxu0 0.0
        %1153 = vmatpush2.msra.mxu0 0.0
        %1154 = vmatprep.subr.mxu0 0.0
        %1155 = vmatpush2.msra.mxu0 0.0
        %1156 = vmatprep.subr.mxu0 0.0
        %1157 = vmatpush2.msra.mxu0 0.0
        %1158 = vmatprep.subr.mxu0 0.0
        %1159 = vmatpush2.msra.mxu0 0.0
        %1160 = vmatprep.mubr.f32.mxu0 0.0
        %v1161 = vand.u32 %v746, 4294901760
        %1162 = vmatmul.mubr.f32.gmra.mxu0 %v1161
        %v1163 = vpop.f32.mrf.mxu0
        %v1164 = vadd.f32 %v1079, %v1163
        %v1165 = vpop.f32.mrf.mxu0
        %1166 = vmatprep.mubr.f32.mxu0 0.0
        %v1167 = vand.u32 %v748, 4294901760
        %1168 = vmatmul.mubr.f32.gmra.mxu0 %v1167
        %v1169 = vpop.f32.mrf.mxu0
        %v1170 = vadd.f32 %v1087, %v1169
        %v1171 = vpop.f32.mrf.mxu0
        %1172 = vdwg.mxu0
        %1173 = vmatprep.subr.mxu0 0.0
        %1174 = vmatpush1.msra.mxu0 0.0
        %1175 = vmatprep.subr.mxu0 0.0
        %1176 = vmatpush1.msra.mxu0 0.0
        %1177 = vmatprep.subr.mxu0 0.0
        %1178 = vmatpush1.msra.mxu0 0.0
        %1179 = vmatprep.subr.mxu0 0.0
        %1180 = vmatpush1.msra.mxu0 0.0
        %1181 = vmatprep.subr.mxu0 0.0
        %1182 = vmatpush1.msra.mxu0 0.0
        %1183 = vmatprep.subr.mxu0 0.0
        %1184 = vmatpush1.msra.mxu0 0.0
        %1185 = vmatprep.subr.mxu0 0.0
        %1186 = vmatpush1.msra.mxu0 0.0
        %1187 = vmatprep.subr.mxu0 0.0
        %1188 = vmatpush1.msra.mxu0 0.0
        %1189 = vmatprep.subr.mxu0 0.0
        %1190 = vmatpush1.msra.mxu0 0.0
        %1191 = vmatprep.subr.mxu0 0.0
        %1192 = vmatpush1.msra.mxu0 0.0
        %1193 = vmatprep.subr.mxu0 0.0
        %1194 = vmatpush1.msra.mxu0 0.0
        %1195 = vmatprep.subr.mxu0 0.0
        %1196 = vmatpush1.msra.mxu0 0.0
        %1197 = vmatprep.subr.mxu0 0.0
        %1198 = vmatpush1.msra.mxu0 0.0
        %1199 = vmatprep.subr.mxu0 0.0
        %1200 = vmatpush1.msra.mxu0 0.0
        %1201 = vmatprep.subr.mxu0 0.0
        %v1202 = vand.u32 %v210, 4294901760
        %1203 = vmatpush1.msra.mxu0 %v1202
        %1204 = vmatprep.subr.mxu0 0.0
        %v1205 = vand.u32 %v209, 4294901760
        %1206 = vmatpush1.msra.mxu0 %v1205
        %1207 = vmatprep.subr.mxu0 0.0
        %1208 = vmatpush2.msra.mxu0 0.0
        %1209 = vmatprep.subr.mxu0 0.0
        %1210 = vmatpush2.msra.mxu0 0.0
        %1211 = vmatprep.subr.mxu0 0.0
        %1212 = vmatpush2.msra.mxu0 0.0
        %1213 = vmatprep.subr.mxu0 0.0
        %1214 = vmatpush2.msra.mxu0 0.0
        %1215 = vmatprep.subr.mxu0 0.0
        %1216 = vmatpush2.msra.mxu0 0.0
        %1217 = vmatprep.subr.mxu0 0.0
        %1218 = vmatpush2.msra.mxu0 0.0
        %1219 = vmatprep.subr.mxu0 0.0
        %1220 = vmatpush2.msra.mxu0 0.0
        %1221 = vmatprep.subr.mxu0 0.0
        %1222 = vmatpush2.msra.mxu0 0.0
        %1223 = vmatprep.subr.mxu0 0.0
        %1224 = vmatpush2.msra.mxu0 0.0
        %1225 = vmatprep.subr.mxu0 0.0
        %1226 = vmatpush2.msra.mxu0 0.0
        %1227 = vmatprep.subr.mxu0 0.0
        %1228 = vmatpush2.msra.mxu0 0.0
        %1229 = vmatprep.subr.mxu0 0.0
        %1230 = vmatpush2.msra.mxu0 0.0
        %1231 = vmatprep.subr.mxu0 0.0
        %1232 = vmatpush2.msra.mxu0 0.0
        %1233 = vmatprep.subr.mxu0 0.0
        %1234 = vmatpush2.msra.mxu0 0.0
        %1235 = vmatprep.subr.mxu0 0.0
        %1236 = vmatpush2.msra.mxu0 0.0
        %1237 = vmatprep.subr.mxu0 0.0
        %1238 = vmatpush2.msra.mxu0 0.0
        %1239 = vmatprep.mubr.f32.mxu0 0.0
        %v1240 = vand.u32 %v746, 4294901760
        %1241 = vmatmul.mubr.f32.gmra.mxu0 %v1240
        %v1242 = vpop.f32.mrf.mxu0
        %v1243 = vadd.f32 %v1164, %v1242
        %v1244 = vpop.f32.mrf.mxu0
        %1245 = vmatprep.mubr.f32.mxu0 0.0
        %v1246 = vand.u32 %v748, 4294901760
        %1247 = vmatmul.mubr.f32.gmra.mxu0 %v1246
        %v1248 = vpop.f32.mrf.mxu0
        %v1249 = vadd.f32 %v1170, %v1248
        %v1250 = vpop.f32.mrf.mxu0
        %1251 = vdwg.mxu0
        %vm1252 = vcmask 64512
        %1253 = vst.msk [vmem:[%s206] sm:$0xff] %vm1252, %v731
        %1254 = vst.msk [vmem:[%s206 + $0x8] sm:$0xff] %vm1252, %v737
        %1257 = vrot.lane.b32.xlu0 %v731, 120
        %v1258 = vpop.permute.xlu0 %1257
        %1259 = vrot.lane.b32.xlu0 %v737, 120
        %v1260 = vpop.permute.xlu0 %1259
        %s1263 = scalar_lea.vmem %s206, 16 [#allocation7]
        %1264 = vst.msk [vmem:[%s1263] sm:$0xff] %vm1252, %v1258
        %1265 = vst.msk [vmem:[%s1263 + $0x8] sm:$0xff] %vm1252, %v1260
        %s1266 = scalar_lea.vmem %s206, 32 [#allocation7]
        %1267 = vst.msk [vmem:[%s1266] sm:$0xff] %vm1252, %v1243
        %1268 = vst.msk [vmem:[%s1266 + $0x8] sm:$0xff] %vm1252, %v1249
        %1271 = vrot.lane.b32.xlu0 %v1243, 120
        %v1272 = vpop.permute.xlu0 %1271
        %1273 = vrot.lane.b32.xlu0 %v1249, 120
        %v1274 = vpop.permute.xlu0 %1273
        %s1277 = scalar_lea.vmem %s206, 48 [#allocation7]
        %1278 = vst.msk [vmem:[%s1277] sm:$0xff] %vm1252, %v1272
        %1279 = vst.msk [vmem:[%s1277 + $0x8] sm:$0xff] %vm1252, %v1274
        %s1280 = sand.u32 %s102, 1
        %s1281 = scalar_lea.sflag [#allocation4], %s1280
        %s1282 = sand.u32 %s102, 1
        %s1283 = smul.addr %s1282, 64
        %s1284 = scalar_lea.vmem [#allocation7], %s1283
        // Predicated region
        $region37: #{tpu_custom_call.1} parent=27 // pred_check
          %p1285 = pneg %p112
        $region38: #{tpu_custom_call.1} parent=27 // pred_check_branch
          %1287 = sbr.rel (%p1285) target = $region40
        $region39: #{tpu_custom_call.1} parent=27 // pred_region
          #allocation9 [shape = 'u32[6]{0}', space=smem, size = 0x18, scoped, tag = 'DMA stride descriptor']
          %s1288 = smul.u32 2, %s26
          %s1290 = ssub.s32 1024, 1024
          %1291 = vsyncadd %s1281, %s1290
          %s1292 = sadd.s32 %s27, %s1288
          %s1293 = smul.addr %s25, 16
          %s1294 = sadd.s32 %s1292, %s1293
          %s1295 = smul.addr %s1294, 128
          %s1296 = scalar_lea.hbm %s2, %s1295
          %s1298 = sshll.u32 1, 14
          %s1299 = sxor.u32 4294967295, %s1298
          %s1302 = sshll.u32 7, 18
          %s1303 = sxor.u32 4294967295, %s1302
          %s1304 = sand.u32 0, %s1303
          %s1306 = sor.u32 %s1304, 0
          %s1307 = sshll.u32 %s1284, 4
          %s1308 = int_to_ptr.vmem [resolvable:$true] %s1307
          %1314 = sst [smem:[#allocation9]] 256
          %s1315 = scalar_lea.smem [#allocation9], 1
          %1316 = sst [smem:[%s1315]] 512
          %s1317 = scalar_lea.smem [#allocation9], 2
          %1318 = sst [smem:[%s1317]] 2
          %s1319 = scalar_lea.smem [#allocation9], 3
          %1320 = sst [smem:[%s1319]] 128
          %s1321 = scalar_lea.smem [#allocation9], 4
          %1322 = sst [smem:[%s1321]] 128
          %s1323 = scalar_lea.smem [#allocation9], 5
          %1324 = sst [smem:[%s1323]] 8
          %1326 = dma.general %s1308, 1024, %s1296, %s1281, 131072, [#allocation9], %s1306, 0
        $region40: #{tpu_custom_call.1} parent=27 // pred_fallthru
          _
      $region28: #{tpu_custom_call.1} parent=5 // pred_fallthru
        _
      %p1327 = scmp.le.s32.totalorder 2, %s15
      // Predicated region
      $region41: #{tpu_custom_call.1} parent=5 // pred_check
        %p1328 = pneg %p1327
      $region42: #{tpu_custom_call.1} parent=5 // pred_check_branch
        %1330 = sbr.rel (%p1328) target = $region44
      $region43: #{tpu_custom_call.1} parent=5 // pred_region
        %s1331 = ssub.s32 %s15, 2
        // Predicated region
        $region45: #{tpu_custom_call.1} parent=43 // pred_check
          %p1332 = pneg %p118
        $region46: #{tpu_custom_call.1} parent=43 // pred_check_branch
          %1334 = sbr.rel (%p1332) target = $region48
        $region47: #{tpu_custom_call.1} parent=43 // pred_region
          %s1335 = sand.u32 %s103, 1
          %s1336 = scalar_lea.sflag [#allocation4], %s1335
          %s1337 = sand.u32 %s103, 1
          %s1338 = smul.addr %s1337, 64
          %s1339 = scalar_lea.vmem [#allocation7], %s1338
          %1340 = dma.done %s1336, 1024
        $region48: #{tpu_custom_call.1} parent=43 // pred_fallthru
          _
      $region44: #{tpu_custom_call.1} parent=5 // pred_fallthru
        _
    $region6: #{tpu_custom_call.1} parent=1 // loop_footer
      %s19 = sadd.s32 1, %s15
    $region7: #{tpu_custom_call.1} parent=1 // loop_footer_branch
      %14 = sbr.rel target = $region3
    $region8: #{tpu_custom_call.1} parent=1 // loop_exit
      _
    %1341 = vsyncpa [#allocation3], 1
    %s1342 = scalar_lea.sflag [#allocation3], 1
    %1343 = vsyncpa %s1342, 1
    %1344 = vsyncpa [#allocation6], 1
    %s1345 = scalar_lea.sflag [#allocation6], 1
    %1346 = vsyncpa %s1345, 1
    %1347 = vsyncpa [#allocation4], 1
    %s1348 = scalar_lea.sflag [#allocation4], 1
    %1349 = vsyncpa %s1348, 1

</llo_original>
